<compile_context>
chip_gen: v7x
topology: tpu7x:2x2x1
jax: 0.10.0
libtpu: 0.0.40
codegen_flags: <defaults>
</compile_context>

<pallas_src>
import functools
import math

import jax
import jax.numpy as jnp
from jax import lax
from jax.experimental import pallas as pl
from jax.experimental.pallas import tpu as pltpu


def _round_up(x, m):
    return -(-x // m) * m


def _interp_matrix(n_in: int, n_out: int, align_corners: bool) -> jnp.ndarray:
    """(n_out, n_in) 1-D linear interpolation matrix matching
    torch.nn.functional.interpolate(mode='bilinear') coordinate rules."""
    out_idx = jnp.arange(n_out, dtype=jnp.float32)
    if align_corners:
        if n_out > 1:
            src = out_idx * (float(n_in - 1) / float(n_out - 1))
        else:
            # PyTorch treats the scale as 0 when the output size is 1.
            src = jnp.zeros((n_out,), dtype=jnp.float32)
    else:
        src = (out_idx + 0.5) * (float(n_in) / float(n_out)) - 0.5
        src = jnp.maximum(src, 0.0)  # PyTorch clamps negative source coords
    src = jnp.minimum(src, float(n_in - 1))
    i0 = jnp.clip(jnp.floor(src).astype(jnp.int32), 0, n_in - 1)
    i1 = jnp.clip(i0 + 1, 0, n_in - 1)
    frac = src - i0.astype(jnp.float32)
    mat = jnp.zeros((n_out, n_in), dtype=jnp.float32)
    mat = mat.at[jnp.arange(n_out), i0].add(1.0 - frac)
    mat = mat.at[jnp.arange(n_out), i1].add(frac)
    return mat


def _nearest_matrix(n_in: int, n_out: int) -> jnp.ndarray:
    """One-hot (n_out, n_in) matrix for legacy PyTorch 'nearest' (floor)."""
    src = jnp.arange(n_out, dtype=jnp.float32) * (float(n_in) / float(n_out))
    src = jnp.clip(src.astype(jnp.int32), 0, n_in - 1)
    return jax.nn.one_hot(src, n_in, dtype=jnp.float32)


def _tpu_vmem_and_cores():
    """(physical VMEM bytes per TensorCore, # TensorCores sharing the grid)."""
    vmem_bytes = 64 << 20          # conservative default = v7x per-core VMEM
    n_cores = None
    try:
        info = pltpu.get_tpu_info()
        vmem_bytes = int(getattr(info, "vmem_capacity_bytes", vmem_bytes))
        for attr in ("num_cores", "core_count", "num_tensorcores"):
            v = getattr(info, attr, None)
            if v:
                n_cores = int(v)
                break
    except Exception:
        pass
    if not n_cores or n_cores <= 0:
        # v7x exposes 64 MiB VMEM per TensorCore and has 2 TCs per chip;
        # v5e/v6e expose 128 MiB and a single TC.
        n_cores = 2 if vmem_bytes <= (64 << 20) else 1
    vmem_bytes = max(vmem_bytes, 32 << 20)
    return vmem_bytes, n_cores


def _choose_cb(n_planes, per_plane_bytes, weight_bytes, budget_bytes, n_cores):
    """Planes per grid step: as many as the VMEM budget allows (multiple of 8
    for sublane alignment), nudged so multi-TC chips get balanced blocks."""
    avail = max(budget_bytes - weight_bytes, 8 * per_plane_bytes)
    cb = max(8, (int(avail // per_plane_bytes) // 8) * 8)
    cb = min(cb, _round_up(n_planes, 8))
    if n_cores > 1:
        n_blocks = -(-n_planes // cb)
        if n_blocks % n_cores != 0:
            target = _round_up(max(n_blocks, n_cores), n_cores)
            cb_bal = _round_up(-(-n_planes // target), 8)
            if cb_bal >= 8:
                cb = min(cb, cb_bal)
    return cb
    # TODO(synk): for very large single planes (H*W >> VMEM budget) a spatial
    # tiling of the plane itself would be required; not needed for MiDaS.


@functools.partial(
    jax.jit,
    static_argnames=("scale_factor", "mode", "align_corners", "use_bf16_mxu"))
def interpolate(x, *, scale_factor=2, mode="bilinear", align_corners=False,
                use_bf16_mxu=False):
    """Pallas equivalent of Interpolate(scale_factor, mode, align_corners)."""
    if mode not in ("bilinear", "linear", "nearest"):
        # TODO(synk): bicubic / area / trilinear modes not implemented.
        raise NotImplementedError(f"mode={mode!r}")

    B, C, H, W = x.shape
    Ho = int(math.floor(H * scale_factor))
    Wo = int(math.floor(W * scale_factor))

    if mode == "nearest":
        # Legacy PyTorch 'nearest' (floor rule), not 'nearest-exact'.
        # TODO(synk): a pure-VPU replicate path would avoid the MXU entirely
        # for integer scale factors; the one-hot matmul is kept for generality.
        Wh_m = _nearest_matrix(H, Ho)
        Ww_m = _interp = _nearest_matrix(W, Wo)
    else:
        Wh_m = _interp_matrix(H, Ho, align_corners)
        Ww_m = _interp_matrix(W, Wo, align_corners)

    # First (height) pass runs in the input precision (bf16 taps for scale 2
    # are exact); accumulation is f32 and the second (width) pass runs from
    # the f32 scratch against f32 weights — no bf16 double rounding.
    mxu_dtype = jnp.bfloat16 if (x.dtype == jnp.bfloat16 or use_bf16_mxu) \
        else jnp.float32
    Wh_m = Wh_m.astype(mxu_dtype)          # (Ho, H)
    WwT = Ww_m.T.astype(jnp.float32)       # (W, Wo)

    N = B * C
    itemsize = jnp.dtype(x.dtype).itemsize
    in_plane = H * W * itemsize
    out_plane = Ho * Wo * itemsize
    scratch_plane = Ho * W * 4                       # f32 height-pass scratch
    result_tmp = Ho * Wo * 4 + out_plane             # width-pass f32 result + cast
    per_plane = 2 * in_plane + 2 * out_plane + scratch_plane + result_tmp
    weight_bytes = Ho * H * jnp.dtype(mxu_dtype).itemsize + W * Wo * 4

    phys_vmem, n_cores = _tpu_vmem_and_cores()
    budget = int(phys_vmem * 0.65)
    Cb = _choose_cb(N, per_plane, weight_bytes, budget, n_cores)

    n_blocks = -(-N // Cb)
    N_pad = n_blocks * Cb

    x2 = x.reshape(N * H, W)
    if N_pad != N:
        x2 = jnp.pad(x2, ((0, (N_pad - N) * H), (0, 0)))

    est_vmem = Cb * per_plane + weight_bytes
    vmem_limit = int(min(max(est_vmem + (8 << 20), 32 << 20),
                         int(phys_vmem * 0.9)))

    cost = pl.CostEstimate(
        flops=int(2 * N * Ho * W * (H + Wo)),
        transcendentals=0,
        bytes_accessed=int(N * (in_plane + out_plane) + weight_bytes),
    )

    def kernel(x_ref, wh_ref, wwt_ref, o_ref, t_ref):
        # x_ref:   (Cb*H, W)   input planes stacked along rows
        # wh_ref:  (Ho, H)     height interpolation matrix (mxu_dtype)
        # wwt_ref: (W, Wo)     width interpolation matrix^T (f32)
        # o_ref:   (Cb*Ho, Wo) output planes stacked along rows
        # t_ref:   (Cb*Ho, W)  f32 scratch holding the height-pass result
        wh = wh_ref[...]

        def height_pass(c):
            if isinstance(c, int):
                r_in, r_out = c * H, c * Ho
            else:
                r_in = pl.multiple_of(c * H, H)
                r_out = pl.multiple_of(c * Ho, Ho)
            xin = x_ref[pl.ds(r_in, H), :].astype(wh.dtype)
            t_ref[pl.ds(r_out, Ho), :] = jnp.dot(
                wh, xin, preferred_element_type=jnp.float32)

        # Height pass: (Ho, H) @ (H, W) per plane.  Statically unrolled for
        # small channel blocks; fori_loop keeps compile time bounded for the
        # large blocks used on real shapes.
        # TODO(synk): fold the height pass into one wide MXU matmul via an
        # in-kernel (Cb, H, W) -> (H, Cb*W) relayout once the Mosaic transpose
        # cost is verified; the op stays HBM-bound at realistic plane sizes.
        if Cb <= 32:
            for c in range(Cb):
                height_pass(c)
        else:
            def body(c, carry):
                height_pass(c)
                return carry
            lax.fori_loop(0, Cb, body, 0)

        # Width pass: ONE (Cb*Ho, W) @ (W, Wo) MXU matmul, f32 accumulation,
        # stored straight to the 2-D output block (no in-kernel reshape).
        o_ref[...] = jnp.dot(
            t_ref[...], wwt_ref[...], preferred_element_type=jnp.float32
        ).astype(o_ref.dtype)

    out2 = pl.pallas_call(
        kernel,
        out_shape=jax.ShapeDtypeStruct((N_pad * Ho, Wo), x.dtype),
        grid_spec=pltpu.PrefetchScalarGridSpec(
            num_scalar_prefetch=0,
            grid=(n_blocks,),
            in_specs=[
                pl.BlockSpec((Cb * H, W), lambda i: (i, 0)),
                pl.BlockSpec((Ho, H), lambda i: (0, 0)),
                pl.BlockSpec((W, Wo), lambda i: (0, 0)),
            ],
            out_specs=pl.BlockSpec((Cb * Ho, Wo), lambda i: (i, 0)),
            scratch_shapes=[pltpu.VMEM((Cb * Ho, W), jnp.float32)],
        ),
        compiler_params=pltpu.CompilerParams(
            dimension_semantics=("parallel",),
            vmem_limit_bytes=vmem_limit,
        ),
        cost_estimate=cost,
    )(x2, Wh_m, WwT)

    if N_pad != N:
        out2 = out2[: N * Ho]
    return out2.reshape(B, C, Ho, Wo)


if __name__ == "__main__":
    key = jax.random.PRNGKey(0)
    key, key2 = jax.random.split(key)
    B, C, H, W = 2, 4, 16, 16
    x = jax.random.normal(key, (B, C, H, W), dtype=jnp.float32)

    # Module defaults per __init__ signature; MiDaS uses scale_factor=2,
    # mode="bilinear", align_corners=False.
    y = jax.block_until_ready(
        interpolate(x, scale_factor=2, mode="bilinear", align_corners=False))
    assert y.shape == (B, C, 2 * H, 2 * W), y.shape
    assert y.dtype == x.dtype

    # Reference: pure-JAX separable bilinear.
    Wh = _interp_matrix(H, 2 * H, False)
    Ww = _interp_matrix(W, 2 * W, False)
    ref = jnp.einsum("oh,bchw,pw->bcop", Wh, x, Ww)
    assert jnp.allclose(y, ref, atol=1e-5, rtol=1e-5)

    # align_corners=True path.
    y_ac = jax.block_until_ready(
        interpolate(x, scale_factor=2, mode="bilinear", align_corners=True))
    Wh_ac = _interp_matrix(H, 2 * H, True)
    Ww_ac = _interp_matrix(W, 2 * W, True)
    ref_ac = jnp.einsum("oh,bchw,pw->bcop", Wh_ac, x, Ww_ac)
    assert jnp.allclose(y_ac, ref_ac, atol=1e-5, rtol=1e-5)

    # nearest path (scale 2 == 2x replication).
    y_nn = jax.block_until_ready(interpolate(x, scale_factor=2, mode="nearest"))
    ref_nn = jnp.repeat(jnp.repeat(x, 2, axis=2), 2, axis=3)
    assert jnp.allclose(y_nn, ref_nn)

    # Non-square spatial dims + plane count not a multiple of the block
    # (exercises the padding path and unaligned H).
    x_odd = jax.random.normal(key2, (2, 3, 12, 20), dtype=jnp.float32)
    y_odd = jax.block_until_ready(
        interpolate(x_odd, scale_factor=2, mode="bilinear", align_corners=False))
    ref_odd = jnp.einsum("oh,bchw,pw->bcop",
                         _interp_matrix(12, 24, False), x_odd,
                         _interp_matrix(20, 40, False))
    assert y_odd.shape == (2, 3, 24, 40)
    assert jnp.allclose(y_odd, ref_odd, atol=1e-5, rtol=1e-5)

    # bf16 path: numerical check against an f32 reference on the bf16 inputs.
    x_bf = x.astype(jnp.bfloat16)
    y_bf = jax.block_until_ready(
        interpolate(x_bf, scale_factor=2, mode="bilinear"))
    assert y_bf.shape == (B, C, 2 * H, 2 * W) and y_bf.dtype == jnp.bfloat16
    ref_bf = jnp.einsum("oh,bchw,pw->bcop", Wh, x_bf.astype(jnp.float32), Ww)
    assert jnp.allclose(y_bf.astype(jnp.float32), ref_bf, atol=2e-2, rtol=2e-2)

    print("KERNEL_OK")
</pallas_src>

<mosaic_0001>
module attributes {stable_mosaic.version = 11 : i64} {
  func.func private @main(%arg0: i32) attributes {dimension_semantics = [#tpu.dimension_semantics<core_parallel>], iteration_bounds = array<i64: 2>, tpu.core_type = #tpu.core_type<sc_scalar_subcore>, window_params = []} {
    return
  }
}

module attributes {stable_mosaic.version = 11 : i64} {
  func.func private @main(%arg0: i32) attributes {dimension_semantics = [#tpu.dimension_semantics<core_parallel>], iteration_bounds = array<i64: 2>, tpu.core_type = #tpu.core_type<sc_scalar_subcore>, window_params = []} {
    return
  }
}

module attributes {stable_mosaic.version = 11 : i64} {
  func.func @kernel(%arg0: i32, %arg1: memref<128x16xf32, #tpu.memory_space<vmem>>, %arg2: memref<32x16xf32, #tpu.memory_space<vmem>>, %arg3: memref<16x32xf32, #tpu.memory_space<vmem>>, %arg4: memref<256x32xf32, #tpu.memory_space<vmem>>, %arg5: memref<256x16xf32, #tpu.memory_space<vmem>>) attributes {dimension_semantics = [#tpu.dimension_semantics<parallel>], iteration_bounds = array<i64: 1>, scalar_prefetch = 0 : i64, scratch_operands = 1 : i64, tpu.core_type = #tpu.core_type<tc>, window_params = [{transform_indices = @transform_0, window_bounds = array<i64: 128, 16>}, {pipeline_mode = #tpu.pipeline_mode<synchronous>, transform_indices = @transform_1, window_bounds = array<i64: 32, 16>}, {pipeline_mode = #tpu.pipeline_mode<synchronous>, transform_indices = @transform_2, window_bounds = array<i64: 16, 32>}, {transform_indices = @transform_3, window_bounds = array<i64: 256, 32>}]} {
    %c0 = arith.constant 0 : index
    %c0_0 = arith.constant 0 : index
    %0 = vector.load %arg2[%c0, %c0_0] : memref<32x16xf32, #tpu.memory_space<vmem>>, vector<32x16xf32>
    %c0_1 = arith.constant 0 : index
    %c0_2 = arith.constant 0 : index
    %1 = vector.load %arg1[%c0_1, %c0_2] : memref<128x16xf32, #tpu.memory_space<vmem>>, vector<16x16xf32>
    %cst = arith.constant dense<0.000000e+00> : vector<32x16xf32>
    %2 = tpu.matmul %0, %1, %cst {dimension_numbers = #tpu.dot_dimension_numbers<[1], [0], [0], [1], [0, 0, 1, 1], [], []>} : vector<32x16xf32>, vector<16x16xf32>, vector<32x16xf32> -> vector<32x16xf32>
    %c0_3 = arith.constant 0 : index
    %c0_4 = arith.constant 0 : index
    %3 = vector.load %arg5[%c0_3, %c0_4] : memref<256x16xf32, #tpu.memory_space<vmem>>, vector<32x16xf32>
    tpu.vector_store %arg5[%c0_3, %c0_4], %2 {strides = array<i32>} : memref<256x16xf32, #tpu.memory_space<vmem>>, vector<32x16xf32>,
    %c16 = arith.constant 16 : index
    %c0_5 = arith.constant 0 : index
    %4 = vector.load %arg1[%c16, %c0_5] : memref<128x16xf32, #tpu.memory_space<vmem>>, vector<16x16xf32>
    %cst_6 = arith.constant dense<0.000000e+00> : vector<32x16xf32>
    %5 = tpu.matmul %0, %4, %cst_6 {dimension_numbers = #tpu.dot_dimension_numbers<[1], [0], [0], [1], [0, 0, 1, 1], [], []>} : vector<32x16xf32>, vector<16x16xf32>, vector<32x16xf32> -> vector<32x16xf32>
    %c32 = arith.constant 32 : index
    %c0_7 = arith.constant 0 : index
    %6 = vector.load %arg5[%c32, %c0_7] : memref<256x16xf32, #tpu.memory_space<vmem>>, vector<32x16xf32>
    tpu.vector_store %arg5[%c32, %c0_7], %5 {strides = array<i32>} : memref<256x16xf32, #tpu.memory_space<vmem>>, vector<32x16xf32>,
    %c32_8 = arith.constant 32 : index
    %c0_9 = arith.constant 0 : index
    %7 = vector.load %arg1[%c32_8, %c0_9] : memref<128x16xf32, #tpu.memory_space<vmem>>, vector<16x16xf32>
    %cst_10 = arith.constant dense<0.000000e+00> : vector<32x16xf32>
    %8 = tpu.matmul %0, %7, %cst_10 {dimension_numbers = #tpu.dot_dimension_numbers<[1], [0], [0], [1], [0, 0, 1, 1], [], []>} : vector<32x16xf32>, vector<16x16xf32>, vector<32x16xf32> -> vector<32x16xf32>
    %c64 = arith.constant 64 : index
    %c0_11 = arith.constant 0 : index
    %9 = vector.load %arg5[%c64, %c0_11] : memref<256x16xf32, #tpu.memory_space<vmem>>, vector<32x16xf32>
    tpu.vector_store %arg5[%c64, %c0_11], %8 {strides = array<i32>} : memref<256x16xf32, #tpu.memory_space<vmem>>, vector<32x16xf32>,
    %c48 = arith.constant 48 : index
    %c0_12 = arith.constant 0 : index
    %10 = vector.load %arg1[%c48, %c0_12] : memref<128x16xf32, #tpu.memory_space<vmem>>, vector<16x16xf32>
    %cst_13 = arith.constant dense<0.000000e+00> : vector<32x16xf32>
    %11 = tpu.matmul %0, %10, %cst_13 {dimension_numbers = #tpu.dot_dimension_numbers<[1], [0], [0], [1], [0, 0, 1, 1], [], []>} : vector<32x16xf32>, vector<16x16xf32>, vector<32x16xf32> -> vector<32x16xf32>
    %c96 = arith.constant 96 : index
    %c0_14 = arith.constant 0 : index
    %12 = vector.load %arg5[%c96, %c0_14] : memref<256x16xf32, #tpu.memory_space<vmem>>, vector<32x16xf32>
    tpu.vector_store %arg5[%c96, %c0_14], %11 {strides = array<i32>} : memref<256x16xf32, #tpu.memory_space<vmem>>, vector<32x16xf32>,
    %c64_15 = arith.constant 64 : index
    %c0_16 = arith.constant 0 : index
    %13 = vector.load %arg1[%c64_15, %c0_16] : memref<128x16xf32, #tpu.memory_space<vmem>>, vector<16x16xf32>
    %cst_17 = arith.constant dense<0.000000e+00> : vector<32x16xf32>
    %14 = tpu.matmul %0, %13, %cst_17 {dimension_numbers = #tpu.dot_dimension_numbers<[1], [0], [0], [1], [0, 0, 1, 1], [], []>} : vector<32x16xf32>, vector<16x16xf32>, vector<32x16xf32> -> vector<32x16xf32>
    %c128 = arith.constant 128 : index
    %c0_18 = arith.constant 0 : index
    %15 = vector.load %arg5[%c128, %c0_18] : memref<256x16xf32, #tpu.memory_space<vmem>>, vector<32x16xf32>
    tpu.vector_store %arg5[%c128, %c0_18], %14 {strides = array<i32>} : memref<256x16xf32, #tpu.memory_space<vmem>>, vector<32x16xf32>,
    %c80 = arith.constant 80 : index
    %c0_19 = arith.constant 0 : index
    %16 = vector.load %arg1[%c80, %c0_19] : memref<128x16xf32, #tpu.memory_space<vmem>>, vector<16x16xf32>
    %cst_20 = arith.constant dense<0.000000e+00> : vector<32x16xf32>
    %17 = tpu.matmul %0, %16, %cst_20 {dimension_numbers = #tpu.dot_dimension_numbers<[1], [0], [0], [1], [0, 0, 1, 1], [], []>} : vector<32x16xf32>, vector<16x16xf32>, vector<32x16xf32> -> vector<32x16xf32>
    %c160 = arith.constant 160 : index
    %c0_21 = arith.constant 0 : index
    %18 = vector.load %arg5[%c160, %c0_21] : memref<256x16xf32, #tpu.memory_space<vmem>>, vector<32x16xf32>
    tpu.vector_store %arg5[%c160, %c0_21], %17 {strides = array<i32>} : memref<256x16xf32, #tpu.memory_space<vmem>>, vector<32x16xf32>,
    %c96_22 = arith.constant 96 : index
    %c0_23 = arith.constant 0 : index
    %19 = vector.load %arg1[%c96_22, %c0_23] : memref<128x16xf32, #tpu.memory_space<vmem>>, vector<16x16xf32>
    %cst_24 = arith.constant dense<0.000000e+00> : vector<32x16xf32>
    %20 = tpu.matmul %0, %19, %cst_24 {dimension_numbers = #tpu.dot_dimension_numbers<[1], [0], [0], [1], [0, 0, 1, 1], [], []>} : vector<32x16xf32>, vector<16x16xf32>, vector<32x16xf32> -> vector<32x16xf32>
    %c192 = arith.constant 192 : index
    %c0_25 = arith.constant 0 : index
    %21 = vector.load %arg5[%c192, %c0_25] : memref<256x16xf32, #tpu.memory_space<vmem>>, vector<32x16xf32>
    tpu.vector_store %arg5[%c192, %c0_25], %20 {strides = array<i32>} : memref<256x16xf32, #tpu.memory_space<vmem>>, vector<32x16xf32>,
    %c112 = arith.constant 112 : index
    %c0_26 = arith.constant 0 : index
    %22 = vector.load %arg1[%c112, %c0_26] : memref<128x16xf32, #tpu.memory_space<vmem>>, vector<16x16xf32>
    %cst_27 = arith.constant dense<0.000000e+00> : vector<32x16xf32>
    %23 = tpu.matmul %0, %22, %cst_27 {dimension_numbers = #tpu.dot_dimension_numbers<[1], [0], [0], [1], [0, 0, 1, 1], [], []>} : vector<32x16xf32>, vector<16x16xf32>, vector<32x16xf32> -> vector<32x16xf32>
    %c224 = arith.constant 224 : index
    %c0_28 = arith.constant 0 : index
    %24 = vector.load %arg5[%c224, %c0_28] : memref<256x16xf32, #tpu.memory_space<vmem>>, vector<32x16xf32>
    tpu.vector_store %arg5[%c224, %c0_28], %23 {strides = array<i32>} : memref<256x16xf32, #tpu.memory_space<vmem>>, vector<32x16xf32>,
    %c0_29 = arith.constant 0 : index
    %c0_30 = arith.constant 0 : index
    %25 = vector.load %arg5[%c0_29, %c0_30] : memref<256x16xf32, #tpu.memory_space<vmem>>, vector<256x16xf32>
    %c0_31 = arith.constant 0 : index
    %c0_32 = arith.constant 0 : index
    %26 = vector.load %arg3[%c0_31, %c0_32] : memref<16x32xf32, #tpu.memory_space<vmem>>, vector<16x32xf32>
    %cst_33 = arith.constant dense<0.000000e+00> : vector<256x32xf32>
    %27 = tpu.matmul %25, %26, %cst_33 {dimension_numbers = #tpu.dot_dimension_numbers<[1], [0], [0], [1], [0, 0, 1, 1], [], []>} : vector<256x16xf32>, vector<16x32xf32>, vector<256x32xf32> -> vector<256x32xf32>
    %c0_34 = arith.constant 0 : index
    %c0_35 = arith.constant 0 : index
    %28 = vector.load %arg4[%c0_34, %c0_35] : memref<256x32xf32, #tpu.memory_space<vmem>>, vector<256x32xf32>
    tpu.vector_store %arg4[%c0_34, %c0_35], %27 {strides = array<i32>} : memref<256x32xf32, #tpu.memory_space<vmem>>, vector<256x32xf32>,
    return
  }
  func.func @transform_0(%arg0: i32) -> (i32, i32) {
    %c0_i32 = arith.constant 0 : i32
    %c0_i32_0 = arith.constant 0 : i32
    return %arg0, %c0_i32 : i32, i32
  }
  func.func @transform_1(%arg0: i32) -> (i32, i32) {
    %c0_i32 = arith.constant 0 : i32
    %c0_i32_0 = arith.constant 0 : i32
    %c0_i32_1 = arith.constant 0 : i32
    return %c0_i32, %c0_i32_0 : i32, i32
  }
  func.func @transform_2(%arg0: i32) -> (i32, i32) {
    %c0_i32 = arith.constant 0 : i32
    %c0_i32_0 = arith.constant 0 : i32
    %c0_i32_1 = arith.constant 0 : i32
    return %c0_i32, %c0_i32_0 : i32, i32
  }
  func.func @transform_3(%arg0: i32) -> (i32, i32) {
    %c0_i32 = arith.constant 0 : i32
    %c0_i32_0 = arith.constant 0 : i32
    return %arg0, %c0_i32 : i32, i32
  }
}

</mosaic_0001>

<llo_original>
// kernel: interpolate.1
$region0: #{interpolate.1}
  #allocation0 [shape = 'u32[]', space=smem, size = 0x4, offset = 0x4, fixed_abs, tag = 'smem constant byte address 0x4 - core index']
  #allocation1 [shape = 'u32[144,128]{1,0:T(1,128)}', space=vmem, size = 0x12000, scoped, tag = 'internal scratch']
  #allocation2 [shape = 'f32[256,16]{1,0:T(8,128)}', space=vmem, size = 0x20000, scoped, tag = 'scratch operand']
  %s0 = inlined_call_operand.vmem [shape: f32[128,16], index: 0, kind: input, shape index: {}]
  %s1 = inlined_call_operand.vmem [shape: f32[32,16], index: 1, kind: input, shape index: {}]
  %s2 = inlined_call_operand.vmem [shape: f32[16,32], index: 2, kind: input, shape index: {}]
  %s3 = inlined_call_operand.hbm [shape: f32[256,32], index: 3, kind: output, shape index: {}]
  %s4 = sld [smem:[#allocation0]]
  $region22: #{interpolate.1} parent=0
    _
  %s6 = ssub.s32 1, %s4
  %s7 = scalar_select 0, %s6, %s4
  $region1: #{interpolate.1} parent=0
    #allocation3 [shape = 'u8[131072]{0}', space=vmem, size = 0x20000, scoped, tag = 'output window, operand 0, single buffered']
    #allocation4 [shape = 's32[1]{0}', space=sflag, size = 0x4, scoped, tag = 'scoped memory for interpolate.1']
    %8 = vsyncpa [#allocation4], 0
    // Predicated region
    $region2: #{interpolate.1} parent=1 // pred_check
      _
    $region3: #{interpolate.1} parent=1 // pred_check_branch
      %10 = sbr.rel (0) target = $region5
    $region4: #{interpolate.1} parent=1 // pred_region
      _
    $region5: #{interpolate.1} parent=1 // pred_fallthru
      _
    // Predicated region
    $region6: #{interpolate.1} parent=1 // pred_check
      _
    $region7: #{interpolate.1} parent=1 // pred_check_branch
      %12 = sbr.rel (0) target = $region9
    $region8: #{interpolate.1} parent=1 // pred_region
      _
    $region9: #{interpolate.1} parent=1 // pred_fallthru
      _
    // Predicated region
    $region10: #{interpolate.1} parent=1 // pred_check
      _
    $region11: #{interpolate.1} parent=1 // pred_check_branch
      %14 = sbr.rel (0) target = $region13
    $region12: #{interpolate.1} parent=1 // pred_region
      _
    $region13: #{interpolate.1} parent=1 // pred_fallthru
      _
    %v15 = vld [vmem:[%s1] sm:$0xff]
    %v16 = vld [vmem:[%s1 + $0x8] sm:$0xff]
    %v17 = vld [vmem:[%s1 + $0x10] sm:$0xff]
    %v18 = vld [vmem:[%s1 + $0x18] sm:$0xff]
    %v19 = vld [vmem:[%s0] sm:$0xff]
    %v20 = vld [vmem:[%s0 + $0x8] sm:$0xff]
    %vm21 = vcmask 130048
    %v23 = vsel %vm21, %v15, 0
    %v26 = vsel %vm21, %v16, 0
    %v29 = vsel %vm21, %v17, 0
    %v32 = vsel %vm21, %v18, 0
    %34 = vmatprep.subr.mxu0 0.0
    %35 = vmatpush1.msra.mxu0 %v19
    %36 = vmatprep.subr.mxu0 0.0
    %37 = vmatpush1.msra.mxu0 %v20
    %38 = vmatprep.subr.mxu0 0.0
    %39 = vmatpush1.msra.mxu0 0.0
    %40 = vmatprep.subr.mxu0 0.0
    %41 = vmatpush1.msra.mxu0 0.0
    %42 = vmatprep.subr.mxu0 0.0
    %43 = vmatpush1.msra.mxu0 0.0
    %44 = vmatprep.subr.mxu0 0.0
    %45 = vmatpush1.msra.mxu0 0.0
    %46 = vmatprep.subr.mxu0 0.0
    %47 = vmatpush1.msra.mxu0 0.0
    %48 = vmatprep.subr.mxu0 0.0
    %49 = vmatpush1.msra.mxu0 0.0
    %50 = vmatprep.subr.mxu0 0.0
    %51 = vmatpush1.msra.mxu0 0.0
    %52 = vmatprep.subr.mxu0 0.0
    %53 = vmatpush1.msra.mxu0 0.0
    %54 = vmatprep.subr.mxu0 0.0
    %55 = vmatpush1.msra.mxu0 0.0
    %56 = vmatprep.subr.mxu0 0.0
    %57 = vmatpush1.msra.mxu0 0.0
    %58 = vmatprep.subr.mxu0 0.0
    %59 = vmatpush1.msra.mxu0 0.0
    %60 = vmatprep.subr.mxu0 0.0
    %61 = vmatpush1.msra.mxu0 0.0
    %62 = vmatprep.subr.mxu0 0.0
    %63 = vmatpush1.msra.mxu0 0.0
    %64 = vmatprep.subr.mxu0 0.0
    %65 = vmatpush1.msra.mxu0 0.0
    %66 = vmatprep.subr.mxu0 0.0
    %67 = vmatpush1.msra.mxu0 0.0
    %68 = vmatprep.subr.mxu0 0.0
    %69 = vmatpush1.msra.mxu0 0.0
    %70 = vmatprep.subr.mxu0 0.0
    %71 = vmatpush1.msra.mxu0 0.0
    %72 = vmatprep.subr.mxu0 0.0
    %73 = vmatpush1.msra.mxu0 0.0
    %74 = vmatprep.subr.mxu0 0.0
    %75 = vmatpush1.msra.mxu0 0.0
    %76 = vmatprep.subr.mxu0 0.0
    %77 = vmatpush1.msra.mxu0 0.0
    %78 = vmatprep.subr.mxu0 0.0
    %79 = vmatpush1.msra.mxu0 0.0
    %80 = vmatprep.subr.mxu0 0.0
    %81 = vmatpush1.msra.mxu0 0.0
    %82 = vmatprep.subr.mxu0 0.0
    %83 = vmatpush1.msra.mxu0 0.0
    %84 = vmatprep.subr.mxu0 0.0
    %85 = vmatpush1.msra.mxu0 0.0
    %86 = vmatprep.subr.mxu0 0.0
    %87 = vmatpush1.msra.mxu0 0.0
    %88 = vmatprep.subr.mxu0 0.0
    %89 = vmatpush1.msra.mxu0 0.0
    %90 = vmatprep.subr.mxu0 0.0
    %91 = vmatpush1.msra.mxu0 0.0
    %92 = vmatprep.subr.mxu0 0.0
    %93 = vmatpush1.msra.mxu0 0.0
    %94 = vmatprep.subr.mxu0 0.0
    %95 = vmatpush1.msra.mxu0 0.0
    %96 = vmatprep.subr.mxu0 0.0
    %97 = vmatpush1.msra.mxu0 0.0
    %98 = vmatprep.mubr.f32.mxu0 0.0
    %99 = vmatmul.mubr.f32.gmra.mrb[0].mxu0 %v23
    %v100 = vpop.f32.mrb[0].mxu0
    %v101 = vadd.f32 0.0, %v100
    %v102 = vpop.f32.mrb[0].mxu0
    %103 = vmatprep.mubr.f32.mxu0 0.0
    %104 = vmatmul.mubr.f32.gmra.mrb[0].mxu0 %v26
    %v105 = vpop.f32.mrb[0].mxu0
    %v106 = vadd.f32 0.0, %v105
    %v107 = vpop.f32.mrb[0].mxu0
    %108 = vmatprep.mubr.f32.mxu0 0.0
    %109 = vmatmul.mubr.f32.gmra.mrb[0].mxu0 %v29
    %v110 = vpop.f32.mrb[0].mxu0
    %v111 = vadd.f32 0.0, %v110
    %v112 = vpop.f32.mrb[0].mxu0
    %113 = vmatprep.mubr.f32.mxu0 0.0
    %114 = vmatmul.mubr.f32.gmra.mrb[0].mxu0 %v32
    %v115 = vpop.f32.mrb[0].mxu0
    %v116 = vadd.f32 0.0, %v115
    %v117 = vpop.f32.mrb[0].mxu0
    %118 = vdwg.mxu0
    %119 = vst.msk [vmem:[#allocation2] sm:$0xff] %vm21, %v101
    %120 = vst.msk [vmem:[#allocation2 + $0x8] sm:$0xff] %vm21, %v106
    %121 = vst.msk [vmem:[#allocation2 + $0x10] sm:$0xff] %vm21, %v111
    %122 = vst.msk [vmem:[#allocation2 + $0x18] sm:$0xff] %vm21, %v116
    %v123 = vld [vmem:[%s0 + $0x10] sm:$0xff]
    %v124 = vld [vmem:[%s0 + $0x18] sm:$0xff]
    %125 = vmatprep.subr.mxu0 0.0
    %126 = vmatpush1.msra.mxu0 %v123
    %127 = vmatprep.subr.mxu0 0.0
    %128 = vmatpush1.msra.mxu0 %v124
    %129 = vmatprep.subr.mxu0 0.0
    %130 = vmatpush1.msra.mxu0 0.0
    %131 = vmatprep.subr.mxu0 0.0
    %132 = vmatpush1.msra.mxu0 0.0
    %133 = vmatprep.subr.mxu0 0.0
    %134 = vmatpush1.msra.mxu0 0.0
    %135 = vmatprep.subr.mxu0 0.0
    %136 = vmatpush1.msra.mxu0 0.0
    %137 = vmatprep.subr.mxu0 0.0
    %138 = vmatpush1.msra.mxu0 0.0
    %139 = vmatprep.subr.mxu0 0.0
    %140 = vmatpush1.msra.mxu0 0.0
    %141 = vmatprep.subr.mxu0 0.0
    %142 = vmatpush1.msra.mxu0 0.0
    %143 = vmatprep.subr.mxu0 0.0
    %144 = vmatpush1.msra.mxu0 0.0
    %145 = vmatprep.subr.mxu0 0.0
    %146 = vmatpush1.msra.mxu0 0.0
    %147 = vmatprep.subr.mxu0 0.0
    %148 = vmatpush1.msra.mxu0 0.0
    %149 = vmatprep.subr.mxu0 0.0
    %150 = vmatpush1.msra.mxu0 0.0
    %151 = vmatprep.subr.mxu0 0.0
    %152 = vmatpush1.msra.mxu0 0.0
    %153 = vmatprep.subr.mxu0 0.0
    %154 = vmatpush1.msra.mxu0 0.0
    %155 = vmatprep.subr.mxu0 0.0
    %156 = vmatpush1.msra.mxu0 0.0
    %157 = vmatprep.subr.mxu0 0.0
    %158 = vmatpush1.msra.mxu0 0.0
    %159 = vmatprep.subr.mxu0 0.0
    %160 = vmatpush1.msra.mxu0 0.0
    %161 = vmatprep.subr.mxu0 0.0
    %162 = vmatpush1.msra.mxu0 0.0
    %163 = vmatprep.subr.mxu0 0.0
    %164 = vmatpush1.msra.mxu0 0.0
    %165 = vmatprep.subr.mxu0 0.0
    %166 = vmatpush1.msra.mxu0 0.0
    %167 = vmatprep.subr.mxu0 0.0
    %168 = vmatpush1.msra.mxu0 0.0
    %169 = vmatprep.subr.mxu0 0.0
    %170 = vmatpush1.msra.mxu0 0.0
    %171 = vmatprep.subr.mxu0 0.0
    %172 = vmatpush1.msra.mxu0 0.0
    %173 = vmatprep.subr.mxu0 0.0
    %174 = vmatpush1.msra.mxu0 0.0
    %175 = vmatprep.subr.mxu0 0.0
    %176 = vmatpush1.msra.mxu0 0.0
    %177 = vmatprep.subr.mxu0 0.0
    %178 = vmatpush1.msra.mxu0 0.0
    %179 = vmatprep.subr.mxu0 0.0
    %180 = vmatpush1.msra.mxu0 0.0
    %181 = vmatprep.subr.mxu0 0.0
    %182 = vmatpush1.msra.mxu0 0.0
    %183 = vmatprep.subr.mxu0 0.0
    %184 = vmatpush1.msra.mxu0 0.0
    %185 = vmatprep.subr.mxu0 0.0
    %186 = vmatpush1.msra.mxu0 0.0
    %187 = vmatprep.subr.mxu0 0.0
    %188 = vmatpush1.msra.mxu0 0.0
    %189 = vmatprep.mubr.f32.mxu0 0.0
    %190 = vmatmul.mubr.f32.gmra.mrb[0].mxu0 %v23
    %v191 = vpop.f32.mrb[0].mxu0
    %v192 = vadd.f32 0.0, %v191
    %v193 = vpop.f32.mrb[0].mxu0
    %194 = vmatprep.mubr.f32.mxu0 0.0
    %195 = vmatmul.mubr.f32.gmra.mrb[0].mxu0 %v26
    %v196 = vpop.f32.mrb[0].mxu0
    %v197 = vadd.f32 0.0, %v196
    %v198 = vpop.f32.mrb[0].mxu0
    %199 = vmatprep.mubr.f32.mxu0 0.0
    %200 = vmatmul.mubr.f32.gmra.mrb[0].mxu0 %v29
    %v201 = vpop.f32.mrb[0].mxu0
    %v202 = vadd.f32 0.0, %v201
    %v203 = vpop.f32.mrb[0].mxu0
    %204 = vmatprep.mubr.f32.mxu0 0.0
    %205 = vmatmul.mubr.f32.gmra.mrb[0].mxu0 %v32
    %v206 = vpop.f32.mrb[0].mxu0
    %v207 = vadd.f32 0.0, %v206
    %v208 = vpop.f32.mrb[0].mxu0
    %209 = vdwg.mxu0
    %210 = vst.msk [vmem:[#allocation2 + $0x20] sm:$0xff] %vm21, %v192
    %211 = vst.msk [vmem:[#allocation2 + $0x28] sm:$0xff] %vm21, %v197
    %212 = vst.msk [vmem:[#allocation2 + $0x30] sm:$0xff] %vm21, %v202
    %213 = vst.msk [vmem:[#allocation2 + $0x38] sm:$0xff] %vm21, %v207
    %v214 = vld [vmem:[%s0 + $0x20] sm:$0xff]
    %v215 = vld [vmem:[%s0 + $0x28] sm:$0xff]
    %216 = vmatprep.subr.mxu0 0.0
    %217 = vmatpush1.msra.mxu0 %v214
    %218 = vmatprep.subr.mxu0 0.0
    %219 = vmatpush1.msra.mxu0 %v215
    %220 = vmatprep.subr.mxu0 0.0
    %221 = vmatpush1.msra.mxu0 0.0
    %222 = vmatprep.subr.mxu0 0.0
    %223 = vmatpush1.msra.mxu0 0.0
    %224 = vmatprep.subr.mxu0 0.0
    %225 = vmatpush1.msra.mxu0 0.0
    %226 = vmatprep.subr.mxu0 0.0
    %227 = vmatpush1.msra.mxu0 0.0
    %228 = vmatprep.subr.mxu0 0.0
    %229 = vmatpush1.msra.mxu0 0.0
    %230 = vmatprep.subr.mxu0 0.0
    %231 = vmatpush1.msra.mxu0 0.0
    %232 = vmatprep.subr.mxu0 0.0
    %233 = vmatpush1.msra.mxu0 0.0
    %234 = vmatprep.subr.mxu0 0.0
    %235 = vmatpush1.msra.mxu0 0.0
    %236 = vmatprep.subr.mxu0 0.0
    %237 = vmatpush1.msra.mxu0 0.0
    %238 = vmatprep.subr.mxu0 0.0
    %239 = vmatpush1.msra.mxu0 0.0
    %240 = vmatprep.subr.mxu0 0.0
    %241 = vmatpush1.msra.mxu0 0.0
    %242 = vmatprep.subr.mxu0 0.0
    %243 = vmatpush1.msra.mxu0 0.0
    %244 = vmatprep.subr.mxu0 0.0
    %245 = vmatpush1.msra.mxu0 0.0
    %246 = vmatprep.subr.mxu0 0.0
    %247 = vmatpush1.msra.mxu0 0.0
    %248 = vmatprep.subr.mxu0 0.0
    %249 = vmatpush1.msra.mxu0 0.0
    %250 = vmatprep.subr.mxu0 0.0
    %251 = vmatpush1.msra.mxu0 0.0
    %252 = vmatprep.subr.mxu0 0.0
    %253 = vmatpush1.msra.mxu0 0.0
    %254 = vmatprep.subr.mxu0 0.0
    %255 = vmatpush1.msra.mxu0 0.0
    %256 = vmatprep.subr.mxu0 0.0
    %257 = vmatpush1.msra.mxu0 0.0
    %258 = vmatprep.subr.mxu0 0.0
    %259 = vmatpush1.msra.mxu0 0.0
    %260 = vmatprep.subr.mxu0 0.0
    %261 = vmatpush1.msra.mxu0 0.0
    %262 = vmatprep.subr.mxu0 0.0
    %263 = vmatpush1.msra.mxu0 0.0
    %264 = vmatprep.subr.mxu0 0.0
    %265 = vmatpush1.msra.mxu0 0.0
    %266 = vmatprep.subr.mxu0 0.0
    %267 = vmatpush1.msra.mxu0 0.0
    %268 = vmatprep.subr.mxu0 0.0
    %269 = vmatpush1.msra.mxu0 0.0
    %270 = vmatprep.subr.mxu0 0.0
    %271 = vmatpush1.msra.mxu0 0.0
    %272 = vmatprep.subr.mxu0 0.0
    %273 = vmatpush1.msra.mxu0 0.0
    %274 = vmatprep.subr.mxu0 0.0
    %275 = vmatpush1.msra.mxu0 0.0
    %276 = vmatprep.subr.mxu0 0.0
    %277 = vmatpush1.msra.mxu0 0.0
    %278 = vmatprep.subr.mxu0 0.0
    %279 = vmatpush1.msra.mxu0 0.0
    %280 = vmatprep.mubr.f32.mxu0 0.0
    %281 = vmatmul.mubr.f32.gmra.mrb[0].mxu0 %v23
    %v282 = vpop.f32.mrb[0].mxu0
    %v283 = vadd.f32 0.0, %v282
    %v284 = vpop.f32.mrb[0].mxu0
    %285 = vmatprep.mubr.f32.mxu0 0.0
    %286 = vmatmul.mubr.f32.gmra.mrb[0].mxu0 %v26
    %v287 = vpop.f32.mrb[0].mxu0
    %v288 = vadd.f32 0.0, %v287
    %v289 = vpop.f32.mrb[0].mxu0
    %290 = vmatprep.mubr.f32.mxu0 0.0
    %291 = vmatmul.mubr.f32.gmra.mrb[0].mxu0 %v29
    %v292 = vpop.f32.mrb[0].mxu0
    %v293 = vadd.f32 0.0, %v292
    %v294 = vpop.f32.mrb[0].mxu0
    %295 = vmatprep.mubr.f32.mxu0 0.0
    %296 = vmatmul.mubr.f32.gmra.mrb[0].mxu0 %v32
    %v297 = vpop.f32.mrb[0].mxu0
    %v298 = vadd.f32 0.0, %v297
    %v299 = vpop.f32.mrb[0].mxu0
    %300 = vdwg.mxu0
    %301 = vst.msk [vmem:[#allocation2 + $0x40] sm:$0xff] %vm21, %v283
    %302 = vst.msk [vmem:[#allocation2 + $0x48] sm:$0xff] %vm21, %v288
    %303 = vst.msk [vmem:[#allocation2 + $0x50] sm:$0xff] %vm21, %v293
    %304 = vst.msk [vmem:[#allocation2 + $0x58] sm:$0xff] %vm21, %v298
    %v305 = vld [vmem:[%s0 + $0x30] sm:$0xff]
    %v306 = vld [vmem:[%s0 + $0x38] sm:$0xff]
    %307 = vmatprep.subr.mxu0 0.0
    %308 = vmatpush1.msra.mxu0 %v305
    %309 = vmatprep.subr.mxu0 0.0
    %310 = vmatpush1.msra.mxu0 %v306
    %311 = vmatprep.subr.mxu0 0.0
    %312 = vmatpush1.msra.mxu0 0.0
    %313 = vmatprep.subr.mxu0 0.0
    %314 = vmatpush1.msra.mxu0 0.0
    %315 = vmatprep.subr.mxu0 0.0
    %316 = vmatpush1.msra.mxu0 0.0
    %317 = vmatprep.subr.mxu0 0.0
    %318 = vmatpush1.msra.mxu0 0.0
    %319 = vmatprep.subr.mxu0 0.0
    %320 = vmatpush1.msra.mxu0 0.0
    %321 = vmatprep.subr.mxu0 0.0
    %322 = vmatpush1.msra.mxu0 0.0
    %323 = vmatprep.subr.mxu0 0.0
    %324 = vmatpush1.msra.mxu0 0.0
    %325 = vmatprep.subr.mxu0 0.0
    %326 = vmatpush1.msra.mxu0 0.0
    %327 = vmatprep.subr.mxu0 0.0
    %328 = vmatpush1.msra.mxu0 0.0
    %329 = vmatprep.subr.mxu0 0.0
    %330 = vmatpush1.msra.mxu0 0.0
    %331 = vmatprep.subr.mxu0 0.0
    %332 = vmatpush1.msra.mxu0 0.0
    %333 = vmatprep.subr.mxu0 0.0
    %334 = vmatpush1.msra.mxu0 0.0
    %335 = vmatprep.subr.mxu0 0.0
    %336 = vmatpush1.msra.mxu0 0.0
    %337 = vmatprep.subr.mxu0 0.0
    %338 = vmatpush1.msra.mxu0 0.0
    %339 = vmatprep.subr.mxu0 0.0
    %340 = vmatpush1.msra.mxu0 0.0
    %341 = vmatprep.subr.mxu0 0.0
    %342 = vmatpush1.msra.mxu0 0.0
    %343 = vmatprep.subr.mxu0 0.0
    %344 = vmatpush1.msra.mxu0 0.0
    %345 = vmatprep.subr.mxu0 0.0
    %346 = vmatpush1.msra.mxu0 0.0
    %347 = vmatprep.subr.mxu0 0.0
    %348 = vmatpush1.msra.mxu0 0.0
    %349 = vmatprep.subr.mxu0 0.0
    %350 = vmatpush1.msra.mxu0 0.0
    %351 = vmatprep.subr.mxu0 0.0
    %352 = vmatpush1.msra.mxu0 0.0
    %353 = vmatprep.subr.mxu0 0.0
    %354 = vmatpush1.msra.mxu0 0.0
    %355 = vmatprep.subr.mxu0 0.0
    %356 = vmatpush1.msra.mxu0 0.0
    %357 = vmatprep.subr.mxu0 0.0
    %358 = vmatpush1.msra.mxu0 0.0
    %359 = vmatprep.subr.mxu0 0.0
    %360 = vmatpush1.msra.mxu0 0.0
    %361 = vmatprep.subr.mxu0 0.0
    %362 = vmatpush1.msra.mxu0 0.0
    %363 = vmatprep.subr.mxu0 0.0
    %364 = vmatpush1.msra.mxu0 0.0
    %365 = vmatprep.subr.mxu0 0.0
    %366 = vmatpush1.msra.mxu0 0.0
    %367 = vmatprep.subr.mxu0 0.0
    %368 = vmatpush1.msra.mxu0 0.0
    %369 = vmatprep.subr.mxu0 0.0
    %370 = vmatpush1.msra.mxu0 0.0
    %371 = vmatprep.mubr.f32.mxu0 0.0
    %372 = vmatmul.mubr.f32.gmra.mrb[0].mxu0 %v23
    %v373 = vpop.f32.mrb[0].mxu0
    %v374 = vadd.f32 0.0, %v373
    %v375 = vpop.f32.mrb[0].mxu0
    %376 = vmatprep.mubr.f32.mxu0 0.0
    %377 = vmatmul.mubr.f32.gmra.mrb[0].mxu0 %v26
    %v378 = vpop.f32.mrb[0].mxu0
    %v379 = vadd.f32 0.0, %v378
    %v380 = vpop.f32.mrb[0].mxu0
    %381 = vmatprep.mubr.f32.mxu0 0.0
    %382 = vmatmul.mubr.f32.gmra.mrb[0].mxu0 %v29
    %v383 = vpop.f32.mrb[0].mxu0
    %v384 = vadd.f32 0.0, %v383
    %v385 = vpop.f32.mrb[0].mxu0
    %386 = vmatprep.mubr.f32.mxu0 0.0
    %387 = vmatmul.mubr.f32.gmra.mrb[0].mxu0 %v32
    %v388 = vpop.f32.mrb[0].mxu0
    %v389 = vadd.f32 0.0, %v388
    %v390 = vpop.f32.mrb[0].mxu0
    %391 = vdwg.mxu0
    %392 = vst.msk [vmem:[#allocation2 + $0x60] sm:$0xff] %vm21, %v374
    %393 = vst.msk [vmem:[#allocation2 + $0x68] sm:$0xff] %vm21, %v379
    %394 = vst.msk [vmem:[#allocation2 + $0x70] sm:$0xff] %vm21, %v384
    %395 = vst.msk [vmem:[#allocation2 + $0x78] sm:$0xff] %vm21, %v389
    %v396 = vld [vmem:[%s0 + $0x40] sm:$0xff]
    %v397 = vld [vmem:[%s0 + $0x48] sm:$0xff]
    %398 = vmatprep.subr.mxu0 0.0
    %399 = vmatpush1.msra.mxu0 %v396
    %400 = vmatprep.subr.mxu0 0.0
    %401 = vmatpush1.msra.mxu0 %v397
    %402 = vmatprep.subr.mxu0 0.0
    %403 = vmatpush1.msra.mxu0 0.0
    %404 = vmatprep.subr.mxu0 0.0
    %405 = vmatpush1.msra.mxu0 0.0
    %406 = vmatprep.subr.mxu0 0.0
    %407 = vmatpush1.msra.mxu0 0.0
    %408 = vmatprep.subr.mxu0 0.0
    %409 = vmatpush1.msra.mxu0 0.0
    %410 = vmatprep.subr.mxu0 0.0
    %411 = vmatpush1.msra.mxu0 0.0
    %412 = vmatprep.subr.mxu0 0.0
    %413 = vmatpush1.msra.mxu0 0.0
    %414 = vmatprep.subr.mxu0 0.0
    %415 = vmatpush1.msra.mxu0 0.0
    %416 = vmatprep.subr.mxu0 0.0
    %417 = vmatpush1.msra.mxu0 0.0
    %418 = vmatprep.subr.mxu0 0.0
    %419 = vmatpush1.msra.mxu0 0.0
    %420 = vmatprep.subr.mxu0 0.0
    %421 = vmatpush1.msra.mxu0 0.0
    %422 = vmatprep.subr.mxu0 0.0
    %423 = vmatpush1.msra.mxu0 0.0
    %424 = vmatprep.subr.mxu0 0.0
    %425 = vmatpush1.msra.mxu0 0.0
    %426 = vmatprep.subr.mxu0 0.0
    %427 = vmatpush1.msra.mxu0 0.0
    %428 = vmatprep.subr.mxu0 0.0
    %429 = vmatpush1.msra.mxu0 0.0
    %430 = vmatprep.subr.mxu0 0.0
    %431 = vmatpush1.msra.mxu0 0.0
    %432 = vmatprep.subr.mxu0 0.0
    %433 = vmatpush1.msra.mxu0 0.0
    %434 = vmatprep.subr.mxu0 0.0
    %435 = vmatpush1.msra.mxu0 0.0
    %436 = vmatprep.subr.mxu0 0.0
    %437 = vmatpush1.msra.mxu0 0.0
    %438 = vmatprep.subr.mxu0 0.0
    %439 = vmatpush1.msra.mxu0 0.0
    %440 = vmatprep.subr.mxu0 0.0
    %441 = vmatpush1.msra.mxu0 0.0
    %442 = vmatprep.subr.mxu0 0.0
    %443 = vmatpush1.msra.mxu0 0.0
    %444 = vmatprep.subr.mxu0 0.0
    %445 = vmatpush1.msra.mxu0 0.0
    %446 = vmatprep.subr.mxu0 0.0
    %447 = vmatpush1.msra.mxu0 0.0
    %448 = vmatprep.subr.mxu0 0.0
    %449 = vmatpush1.msra.mxu0 0.0
    %450 = vmatprep.subr.mxu0 0.0
    %451 = vmatpush1.msra.mxu0 0.0
    %452 = vmatprep.subr.mxu0 0.0
    %453 = vmatpush1.msra.mxu0 0.0
    %454 = vmatprep.subr.mxu0 0.0
    %455 = vmatpush1.msra.mxu0 0.0
    %456 = vmatprep.subr.mxu0 0.0
    %457 = vmatpush1.msra.mxu0 0.0
    %458 = vmatprep.subr.mxu0 0.0
    %459 = vmatpush1.msra.mxu0 0.0
    %460 = vmatprep.subr.mxu0 0.0
    %461 = vmatpush1.msra.mxu0 0.0
    %462 = vmatprep.mubr.f32.mxu0 0.0
    %463 = vmatmul.mubr.f32.gmra.mrb[0].mxu0 %v23
    %v464 = vpop.f32.mrb[0].mxu0
    %v465 = vadd.f32 0.0, %v464
    %v466 = vpop.f32.mrb[0].mxu0
    %467 = vmatprep.mubr.f32.mxu0 0.0
    %468 = vmatmul.mubr.f32.gmra.mrb[0].mxu0 %v26
    %v469 = vpop.f32.mrb[0].mxu0
    %v470 = vadd.f32 0.0, %v469
    %v471 = vpop.f32.mrb[0].mxu0
    %472 = vmatprep.mubr.f32.mxu0 0.0
    %473 = vmatmul.mubr.f32.gmra.mrb[0].mxu0 %v29
    %v474 = vpop.f32.mrb[0].mxu0
    %v475 = vadd.f32 0.0, %v474
    %v476 = vpop.f32.mrb[0].mxu0
    %477 = vmatprep.mubr.f32.mxu0 0.0
    %478 = vmatmul.mubr.f32.gmra.mrb[0].mxu0 %v32
    %v479 = vpop.f32.mrb[0].mxu0
    %v480 = vadd.f32 0.0, %v479
    %v481 = vpop.f32.mrb[0].mxu0
    %482 = vdwg.mxu0
    %483 = vst.msk [vmem:[#allocation2 + $0x80] sm:$0xff] %vm21, %v465
    %484 = vst.msk [vmem:[#allocation2 + $0x88] sm:$0xff] %vm21, %v470
    %485 = vst.msk [vmem:[#allocation2 + $0x90] sm:$0xff] %vm21, %v475
    %486 = vst.msk [vmem:[#allocation2 + $0x98] sm:$0xff] %vm21, %v480
    %v487 = vld [vmem:[%s0 + $0x50] sm:$0xff]
    %v488 = vld [vmem:[%s0 + $0x58] sm:$0xff]
    %489 = vmatprep.subr.mxu0 0.0
    %490 = vmatpush1.msra.mxu0 %v487
    %491 = vmatprep.subr.mxu0 0.0
    %492 = vmatpush1.msra.mxu0 %v488
    %493 = vmatprep.subr.mxu0 0.0
    %494 = vmatpush1.msra.mxu0 0.0
    %495 = vmatprep.subr.mxu0 0.0
    %496 = vmatpush1.msra.mxu0 0.0
    %497 = vmatprep.subr.mxu0 0.0
    %498 = vmatpush1.msra.mxu0 0.0
    %499 = vmatprep.subr.mxu0 0.0
    %500 = vmatpush1.msra.mxu0 0.0
    %501 = vmatprep.subr.mxu0 0.0
    %502 = vmatpush1.msra.mxu0 0.0
    %503 = vmatprep.subr.mxu0 0.0
    %504 = vmatpush1.msra.mxu0 0.0
    %505 = vmatprep.subr.mxu0 0.0
    %506 = vmatpush1.msra.mxu0 0.0
    %507 = vmatprep.subr.mxu0 0.0
    %508 = vmatpush1.msra.mxu0 0.0
    %509 = vmatprep.subr.mxu0 0.0
    %510 = vmatpush1.msra.mxu0 0.0
    %511 = vmatprep.subr.mxu0 0.0
    %512 = vmatpush1.msra.mxu0 0.0
    %513 = vmatprep.subr.mxu0 0.0
    %514 = vmatpush1.msra.mxu0 0.0
    %515 = vmatprep.subr.mxu0 0.0
    %516 = vmatpush1.msra.mxu0 0.0
    %517 = vmatprep.subr.mxu0 0.0
    %518 = vmatpush1.msra.mxu0 0.0
    %519 = vmatprep.subr.mxu0 0.0
    %520 = vmatpush1.msra.mxu0 0.0
    %521 = vmatprep.subr.mxu0 0.0
    %522 = vmatpush1.msra.mxu0 0.0
    %523 = vmatprep.subr.mxu0 0.0
    %524 = vmatpush1.msra.mxu0 0.0
    %525 = vmatprep.subr.mxu0 0.0
    %526 = vmatpush1.msra.mxu0 0.0
    %527 = vmatprep.subr.mxu0 0.0
    %528 = vmatpush1.msra.mxu0 0.0
    %529 = vmatprep.subr.mxu0 0.0
    %530 = vmatpush1.msra.mxu0 0.0
    %531 = vmatprep.subr.mxu0 0.0
    %532 = vmatpush1.msra.mxu0 0.0
    %533 = vmatprep.subr.mxu0 0.0
    %534 = vmatpush1.msra.mxu0 0.0
    %535 = vmatprep.subr.mxu0 0.0
    %536 = vmatpush1.msra.mxu0 0.0
    %537 = vmatprep.subr.mxu0 0.0
    %538 = vmatpush1.msra.mxu0 0.0
    %539 = vmatprep.subr.mxu0 0.0
    %540 = vmatpush1.msra.mxu0 0.0
    %541 = vmatprep.subr.mxu0 0.0
    %542 = vmatpush1.msra.mxu0 0.0
    %543 = vmatprep.subr.mxu0 0.0
    %544 = vmatpush1.msra.mxu0 0.0
    %545 = vmatprep.subr.mxu0 0.0
    %546 = vmatpush1.msra.mxu0 0.0
    %547 = vmatprep.subr.mxu0 0.0
    %548 = vmatpush1.msra.mxu0 0.0
    %549 = vmatprep.subr.mxu0 0.0
    %550 = vmatpush1.msra.mxu0 0.0
    %551 = vmatprep.subr.mxu0 0.0
    %552 = vmatpush1.msra.mxu0 0.0
    %553 = vmatprep.mubr.f32.mxu0 0.0
    %554 = vmatmul.mubr.f32.gmra.mrb[0].mxu0 %v23
    %v555 = vpop.f32.mrb[0].mxu0
    %v556 = vadd.f32 0.0, %v555
    %v557 = vpop.f32.mrb[0].mxu0
    %558 = vmatprep.mubr.f32.mxu0 0.0
    %559 = vmatmul.mubr.f32.gmra.mrb[0].mxu0 %v26
    %v560 = vpop.f32.mrb[0].mxu0
    %v561 = vadd.f32 0.0, %v560
    %v562 = vpop.f32.mrb[0].mxu0
    %563 = vmatprep.mubr.f32.mxu0 0.0
    %564 = vmatmul.mubr.f32.gmra.mrb[0].mxu0 %v29
    %v565 = vpop.f32.mrb[0].mxu0
    %v566 = vadd.f32 0.0, %v565
    %v567 = vpop.f32.mrb[0].mxu0
    %568 = vmatprep.mubr.f32.mxu0 0.0
    %569 = vmatmul.mubr.f32.gmra.mrb[0].mxu0 %v32
    %v570 = vpop.f32.mrb[0].mxu0
    %v571 = vadd.f32 0.0, %v570
    %v572 = vpop.f32.mrb[0].mxu0
    %573 = vdwg.mxu0
    %574 = vst.msk [vmem:[#allocation2 + $0xa0] sm:$0xff] %vm21, %v556
    %575 = vst.msk [vmem:[#allocation2 + $0xa8] sm:$0xff] %vm21, %v561
    %576 = vst.msk [vmem:[#allocation2 + $0xb0] sm:$0xff] %vm21, %v566
    %577 = vst.msk [vmem:[#allocation2 + $0xb8] sm:$0xff] %vm21, %v571
    %v578 = vld [vmem:[%s0 + $0x60] sm:$0xff]
    %v579 = vld [vmem:[%s0 + $0x68] sm:$0xff]
    %580 = vmatprep.subr.mxu0 0.0
    %581 = vmatpush1.msra.mxu0 %v578
    %582 = vmatprep.subr.mxu0 0.0
    %583 = vmatpush1.msra.mxu0 %v579
    %584 = vmatprep.subr.mxu0 0.0
    %585 = vmatpush1.msra.mxu0 0.0
    %586 = vmatprep.subr.mxu0 0.0
    %587 = vmatpush1.msra.mxu0 0.0
    %588 = vmatprep.subr.mxu0 0.0
    %589 = vmatpush1.msra.mxu0 0.0
    %590 = vmatprep.subr.mxu0 0.0
    %591 = vmatpush1.msra.mxu0 0.0
    %592 = vmatprep.subr.mxu0 0.0
    %593 = vmatpush1.msra.mxu0 0.0
    %594 = vmatprep.subr.mxu0 0.0
    %595 = vmatpush1.msra.mxu0 0.0
    %596 = vmatprep.subr.mxu0 0.0
    %597 = vmatpush1.msra.mxu0 0.0
    %598 = vmatprep.subr.mxu0 0.0
    %599 = vmatpush1.msra.mxu0 0.0
    %600 = vmatprep.subr.mxu0 0.0
    %601 = vmatpush1.msra.mxu0 0.0
    %602 = vmatprep.subr.mxu0 0.0
    %603 = vmatpush1.msra.mxu0 0.0
    %604 = vmatprep.subr.mxu0 0.0
    %605 = vmatpush1.msra.mxu0 0.0
    %606 = vmatprep.subr.mxu0 0.0
    %607 = vmatpush1.msra.mxu0 0.0
    %608 = vmatprep.subr.mxu0 0.0
    %609 = vmatpush1.msra.mxu0 0.0
    %610 = vmatprep.subr.mxu0 0.0
    %611 = vmatpush1.msra.mxu0 0.0
    %612 = vmatprep.subr.mxu0 0.0
    %613 = vmatpush1.msra.mxu0 0.0
    %614 = vmatprep.subr.mxu0 0.0
    %615 = vmatpush1.msra.mxu0 0.0
    %616 = vmatprep.subr.mxu0 0.0
    %617 = vmatpush1.msra.mxu0 0.0
    %618 = vmatprep.subr.mxu0 0.0
    %619 = vmatpush1.msra.mxu0 0.0
    %620 = vmatprep.subr.mxu0 0.0
    %621 = vmatpush1.msra.mxu0 0.0
    %622 = vmatprep.subr.mxu0 0.0
    %623 = vmatpush1.msra.mxu0 0.0
    %624 = vmatprep.subr.mxu0 0.0
    %625 = vmatpush1.msra.mxu0 0.0
    %626 = vmatprep.subr.mxu0 0.0
    %627 = vmatpush1.msra.mxu0 0.0
    %628 = vmatprep.subr.mxu0 0.0
    %629 = vmatpush1.msra.mxu0 0.0
    %630 = vmatprep.subr.mxu0 0.0
    %631 = vmatpush1.msra.mxu0 0.0
    %632 = vmatprep.subr.mxu0 0.0
    %633 = vmatpush1.msra.mxu0 0.0
    %634 = vmatprep.subr.mxu0 0.0
    %635 = vmatpush1.msra.mxu0 0.0
    %636 = vmatprep.subr.mxu0 0.0
    %637 = vmatpush1.msra.mxu0 0.0
    %638 = vmatprep.subr.mxu0 0.0
    %639 = vmatpush1.msra.mxu0 0.0
    %640 = vmatprep.subr.mxu0 0.0
    %641 = vmatpush1.msra.mxu0 0.0
    %642 = vmatprep.subr.mxu0 0.0
    %643 = vmatpush1.msra.mxu0 0.0
    %644 = vmatprep.mubr.f32.mxu0 0.0
    %645 = vmatmul.mubr.f32.gmra.mrb[0].mxu0 %v23
    %v646 = vpop.f32.mrb[0].mxu0
    %v647 = vadd.f32 0.0, %v646
    %v648 = vpop.f32.mrb[0].mxu0
    %649 = vmatprep.mubr.f32.mxu0 0.0
    %650 = vmatmul.mubr.f32.gmra.mrb[0].mxu0 %v26
    %v651 = vpop.f32.mrb[0].mxu0
    %v652 = vadd.f32 0.0, %v651
    %v653 = vpop.f32.mrb[0].mxu0
    %654 = vmatprep.mubr.f32.mxu0 0.0
    %655 = vmatmul.mubr.f32.gmra.mrb[0].mxu0 %v29
    %v656 = vpop.f32.mrb[0].mxu0
    %v657 = vadd.f32 0.0, %v656
    %v658 = vpop.f32.mrb[0].mxu0
    %659 = vmatprep.mubr.f32.mxu0 0.0
    %660 = vmatmul.mubr.f32.gmra.mrb[0].mxu0 %v32
    %v661 = vpop.f32.mrb[0].mxu0
    %v662 = vadd.f32 0.0, %v661
    %v663 = vpop.f32.mrb[0].mxu0
    %664 = vdwg.mxu0
    %665 = vst.msk [vmem:[#allocation2 + $0xc0] sm:$0xff] %vm21, %v647
    %666 = vst.msk [vmem:[#allocation2 + $0xc8] sm:$0xff] %vm21, %v652
    %667 = vst.msk [vmem:[#allocation2 + $0xd0] sm:$0xff] %vm21, %v657
    %668 = vst.msk [vmem:[#allocation2 + $0xd8] sm:$0xff] %vm21, %v662
    %v669 = vld [vmem:[%s0 + $0x70] sm:$0xff]
    %v670 = vld [vmem:[%s0 + $0x78] sm:$0xff]
    %671 = vmatprep.subr.mxu0 0.0
    %672 = vmatpush1.msra.mxu0 %v669
    %673 = vmatprep.subr.mxu0 0.0
    %674 = vmatpush1.msra.mxu0 %v670
    %675 = vmatprep.subr.mxu0 0.0
    %676 = vmatpush1.msra.mxu0 0.0
    %677 = vmatprep.subr.mxu0 0.0
    %678 = vmatpush1.msra.mxu0 0.0
    %679 = vmatprep.subr.mxu0 0.0
    %680 = vmatpush1.msra.mxu0 0.0
    %681 = vmatprep.subr.mxu0 0.0
    %682 = vmatpush1.msra.mxu0 0.0
    %683 = vmatprep.subr.mxu0 0.0
    %684 = vmatpush1.msra.mxu0 0.0
    %685 = vmatprep.subr.mxu0 0.0
    %686 = vmatpush1.msra.mxu0 0.0
    %687 = vmatprep.subr.mxu0 0.0
    %688 = vmatpush1.msra.mxu0 0.0
    %689 = vmatprep.subr.mxu0 0.0
    %690 = vmatpush1.msra.mxu0 0.0
    %691 = vmatprep.subr.mxu0 0.0
    %692 = vmatpush1.msra.mxu0 0.0
    %693 = vmatprep.subr.mxu0 0.0
    %694 = vmatpush1.msra.mxu0 0.0
    %695 = vmatprep.subr.mxu0 0.0
    %696 = vmatpush1.msra.mxu0 0.0
    %697 = vmatprep.subr.mxu0 0.0
    %698 = vmatpush1.msra.mxu0 0.0
    %699 = vmatprep.subr.mxu0 0.0
    %700 = vmatpush1.msra.mxu0 0.0
    %701 = vmatprep.subr.mxu0 0.0
    %702 = vmatpush1.msra.mxu0 0.0
    %703 = vmatprep.subr.mxu0 0.0
    %704 = vmatpush1.msra.mxu0 0.0
    %705 = vmatprep.subr.mxu0 0.0
    %706 = vmatpush1.msra.mxu0 0.0
    %707 = vmatprep.subr.mxu0 0.0
    %708 = vmatpush1.msra.mxu0 0.0
    %709 = vmatprep.subr.mxu0 0.0
    %710 = vmatpush1.msra.mxu0 0.0
    %711 = vmatprep.subr.mxu0 0.0
    %712 = vmatpush1.msra.mxu0 0.0
    %713 = vmatprep.subr.mxu0 0.0
    %714 = vmatpush1.msra.mxu0 0.0
    %715 = vmatprep.subr.mxu0 0.0
    %716 = vmatpush1.msra.mxu0 0.0
    %717 = vmatprep.subr.mxu0 0.0
    %718 = vmatpush1.msra.mxu0 0.0
    %719 = vmatprep.subr.mxu0 0.0
    %720 = vmatpush1.msra.mxu0 0.0
    %721 = vmatprep.subr.mxu0 0.0
    %722 = vmatpush1.msra.mxu0 0.0
    %723 = vmatprep.subr.mxu0 0.0
    %724 = vmatpush1.msra.mxu0 0.0
    %725 = vmatprep.subr.mxu0 0.0
    %726 = vmatpush1.msra.mxu0 0.0
    %727 = vmatprep.subr.mxu0 0.0
    %728 = vmatpush1.msra.mxu0 0.0
    %729 = vmatprep.subr.mxu0 0.0
    %730 = vmatpush1.msra.mxu0 0.0
    %731 = vmatprep.subr.mxu0 0.0
    %732 = vmatpush1.msra.mxu0 0.0
    %733 = vmatprep.subr.mxu0 0.0
    %734 = vmatpush1.msra.mxu0 0.0
    %735 = vmatprep.mubr.f32.mxu0 0.0
    %736 = vmatmul.mubr.f32.gmra.mrb[0].mxu0 %v23
    %v737 = vpop.f32.mrb[0].mxu0
    %v738 = vadd.f32 0.0, %v737
    %v739 = vpop.f32.mrb[0].mxu0
    %740 = vmatprep.mubr.f32.mxu0 0.0
    %741 = vmatmul.mubr.f32.gmra.mrb[0].mxu0 %v26
    %v742 = vpop.f32.mrb[0].mxu0
    %v743 = vadd.f32 0.0, %v742
    %v744 = vpop.f32.mrb[0].mxu0
    %745 = vmatprep.mubr.f32.mxu0 0.0
    %746 = vmatmul.mubr.f32.gmra.mrb[0].mxu0 %v29
    %v747 = vpop.f32.mrb[0].mxu0
    %v748 = vadd.f32 0.0, %v747
    %v749 = vpop.f32.mrb[0].mxu0
    %750 = vmatprep.mubr.f32.mxu0 0.0
    %751 = vmatmul.mubr.f32.gmra.mrb[0].mxu0 %v32
    %v752 = vpop.f32.mrb[0].mxu0
    %v753 = vadd.f32 0.0, %v752
    %v754 = vpop.f32.mrb[0].mxu0
    %755 = vdwg.mxu0
    %756 = vst.msk [vmem:[#allocation2 + $0xe0] sm:$0xff] %vm21, %v738
    %757 = vst.msk [vmem:[#allocation2 + $0xe8] sm:$0xff] %vm21, %v743
    %758 = vst.msk [vmem:[#allocation2 + $0xf0] sm:$0xff] %vm21, %v748
    %759 = vst.msk [vmem:[#allocation2 + $0xf8] sm:$0xff] %vm21, %v753
    %v760 = vld [vmem:[#allocation2] sm:$0xff]
    %v761 = vld [vmem:[#allocation2 + $0x8] sm:$0xff]
    %v762 = vld [vmem:[#allocation2 + $0x10] sm:$0xff]
    %v763 = vld [vmem:[#allocation2 + $0x18] sm:$0xff]
    %v764 = vld [vmem:[#allocation2 + $0x20] sm:$0xff]
    %v765 = vld [vmem:[#allocation2 + $0x28] sm:$0xff]
    %v766 = vld [vmem:[#allocation2 + $0x30] sm:$0xff]
    %v767 = vld [vmem:[#allocation2 + $0x38] sm:$0xff]
    %v768 = vld [vmem:[#allocation2 + $0x40] sm:$0xff]
    %v769 = vld [vmem:[#allocation2 + $0x48] sm:$0xff]
    %v770 = vld [vmem:[#allocation2 + $0x50] sm:$0xff]
    %v771 = vld [vmem:[#allocation2 + $0x58] sm:$0xff]
    %v772 = vld [vmem:[#allocation2 + $0x60] sm:$0xff]
    %v773 = vld [vmem:[#allocation2 + $0x68] sm:$0xff]
    %v774 = vld [vmem:[#allocation2 + $0x70] sm:$0xff]
    %v775 = vld [vmem:[#allocation2 + $0x78] sm:$0xff]
    %v776 = vld [vmem:[#allocation2 + $0x80] sm:$0xff]
    %v777 = vld [vmem:[#allocation2 + $0x88] sm:$0xff]
    %v778 = vld [vmem:[#allocation2 + $0x90] sm:$0xff]
    %v779 = vld [vmem:[#allocation2 + $0x98] sm:$0xff]
    %v780 = vld [vmem:[#allocation2 + $0xa0] sm:$0xff]
    %v781 = vld [vmem:[#allocation2 + $0xa8] sm:$0xff]
    %v782 = vld [vmem:[#allocation2 + $0xb0] sm:$0xff]
    %v783 = vld [vmem:[#allocation2 + $0xb8] sm:$0xff]
    %v784 = vld [vmem:[#allocation2 + $0xc0] sm:$0xff]
    %v785 = vld [vmem:[#allocation2 + $0xc8] sm:$0xff]
    %v786 = vld [vmem:[#allocation2 + $0xd0] sm:$0xff]
    %v787 = vld [vmem:[#allocation2 + $0xd8] sm:$0xff]
    %v788 = vld [vmem:[#allocation2 + $0xe0] sm:$0xff]
    %v789 = vld [vmem:[#allocation2 + $0xe8] sm:$0xff]
    %v790 = vld [vmem:[#allocation2 + $0xf0] sm:$0xff]
    %v791 = vld [vmem:[#allocation2 + $0xf8] sm:$0xff]
    %v792 = vld [vmem:[%s2] sm:$0xff]
    %v793 = vld [vmem:[%s2 + $0x8] sm:$0xff]
    %v795 = vsel %vm21, %v760, 0
    %v798 = vsel %vm21, %v761, 0
    %v801 = vsel %vm21, %v762, 0
    %v804 = vsel %vm21, %v763, 0
    %v807 = vsel %vm21, %v764, 0
    %v810 = vsel %vm21, %v765, 0
    %v813 = vsel %vm21, %v766, 0
    %v816 = vsel %vm21, %v767, 0
    %v819 = vsel %vm21, %v768, 0
    %v822 = vsel %vm21, %v769, 0
    %v825 = vsel %vm21, %v770, 0
    %v828 = vsel %vm21, %v771, 0
    %v831 = vsel %vm21, %v772, 0
    %v834 = vsel %vm21, %v773, 0
    %v837 = vsel %vm21, %v774, 0
    %v840 = vsel %vm21, %v775, 0
    %v843 = vsel %vm21, %v776, 0
    %v846 = vsel %vm21, %v777, 0
    %v849 = vsel %vm21, %v778, 0
    %v852 = vsel %vm21, %v779, 0
    %v855 = vsel %vm21, %v780, 0
    %v858 = vsel %vm21, %v781, 0
    %v861 = vsel %vm21, %v782, 0
    %v864 = vsel %vm21, %v783, 0
    %v867 = vsel %vm21, %v784, 0
    %v870 = vsel %vm21, %v785, 0
    %v873 = vsel %vm21, %v786, 0
    %v876 = vsel %vm21, %v787, 0
    %v879 = vsel %vm21, %v788, 0
    %v882 = vsel %vm21, %v789, 0
    %v885 = vsel %vm21, %v790, 0
    %v888 = vsel %vm21, %v791, 0
    %890 = vmatprep.subr.mxu0 0.0
    %891 = vmatpush1.msra.mxu0 %v792
    %892 = vmatprep.subr.mxu0 0.0
    %893 = vmatpush1.msra.mxu0 %v793
    %894 = vmatprep.subr.mxu0 0.0
    %895 = vmatpush1.msra.mxu0 0.0
    %896 = vmatprep.subr.mxu0 0.0
    %897 = vmatpush1.msra.mxu0 0.0
    %898 = vmatprep.subr.mxu0 0.0
    %899 = vmatpush1.msra.mxu0 0.0
    %900 = vmatprep.subr.mxu0 0.0
    %901 = vmatpush1.msra.mxu0 0.0
    %902 = vmatprep.subr.mxu0 0.0
    %903 = vmatpush1.msra.mxu0 0.0
    %904 = vmatprep.subr.mxu0 0.0
    %905 = vmatpush1.msra.mxu0 0.0
    %906 = vmatprep.subr.mxu0 0.0
    %907 = vmatpush1.msra.mxu0 0.0
    %908 = vmatprep.subr.mxu0 0.0
    %909 = vmatpush1.msra.mxu0 0.0
    %910 = vmatprep.subr.mxu0 0.0
    %911 = vmatpush1.msra.mxu0 0.0
    %912 = vmatprep.subr.mxu0 0.0
    %913 = vmatpush1.msra.mxu0 0.0
    %914 = vmatprep.subr.mxu0 0.0
    %915 = vmatpush1.msra.mxu0 0.0
    %916 = vmatprep.subr.mxu0 0.0
    %917 = vmatpush1.msra.mxu0 0.0
    %918 = vmatprep.subr.mxu0 0.0
    %919 = vmatpush1.msra.mxu0 0.0
    %920 = vmatprep.subr.mxu0 0.0
    %921 = vmatpush1.msra.mxu0 0.0
    %922 = vmatprep.subr.mxu0 0.0
    %923 = vmatpush1.msra.mxu0 0.0
    %924 = vmatprep.subr.mxu0 0.0
    %925 = vmatpush1.msra.mxu0 0.0
    %926 = vmatprep.subr.mxu0 0.0
    %927 = vmatpush1.msra.mxu0 0.0
    %928 = vmatprep.subr.mxu0 0.0
    %929 = vmatpush1.msra.mxu0 0.0
    %930 = vmatprep.subr.mxu0 0.0
    %931 = vmatpush1.msra.mxu0 0.0
    %932 = vmatprep.subr.mxu0 0.0
    %933 = vmatpush1.msra.mxu0 0.0
    %934 = vmatprep.subr.mxu0 0.0
    %935 = vmatpush1.msra.mxu0 0.0
    %936 = vmatprep.subr.mxu0 0.0
    %937 = vmatpush1.msra.mxu0 0.0
    %938 = vmatprep.subr.mxu0 0.0
    %939 = vmatpush1.msra.mxu0 0.0
    %940 = vmatprep.subr.mxu0 0.0
    %941 = vmatpush1.msra.mxu0 0.0
    %942 = vmatprep.subr.mxu0 0.0
    %943 = vmatpush1.msra.mxu0 0.0
    %944 = vmatprep.subr.mxu0 0.0
    %945 = vmatpush1.msra.mxu0 0.0
    %946 = vmatprep.subr.mxu0 0.0
    %947 = vmatpush1.msra.mxu0 0.0
    %948 = vmatprep.subr.mxu0 0.0
    %949 = vmatpush1.msra.mxu0 0.0
    %950 = vmatprep.subr.mxu0 0.0
    %951 = vmatpush1.msra.mxu0 0.0
    %952 = vmatprep.subr.mxu0 0.0
    %953 = vmatpush1.msra.mxu0 0.0
    %954 = vmatprep.mubr.f32.mxu0 0.0
    %955 = vmatmul.mubr.f32.gmra.mrb[0].mxu0 %v795
    %v956 = vpop.f32.mrb[0].mxu0
    %v957 = vadd.f32 0.0, %v956
    %v958 = vpop.f32.mrb[0].mxu0
    %959 = vmatprep.mubr.f32.mxu0 0.0
    %960 = vmatmul.mubr.f32.gmra.mrb[0].mxu0 %v798
    %v961 = vpop.f32.mrb[0].mxu0
    %v962 = vadd.f32 0.0, %v961
    %v963 = vpop.f32.mrb[0].mxu0
    %964 = vmatprep.mubr.f32.mxu0 0.0
    %965 = vmatmul.mubr.f32.gmra.mrb[0].mxu0 %v801
    %v966 = vpop.f32.mrb[0].mxu0
    %v967 = vadd.f32 0.0, %v966
    %v968 = vpop.f32.mrb[0].mxu0
    %969 = vmatprep.mubr.f32.mxu0 0.0
    %970 = vmatmul.mubr.f32.gmra.mrb[0].mxu0 %v804
    %v971 = vpop.f32.mrb[0].mxu0
    %v972 = vadd.f32 0.0, %v971
    %v973 = vpop.f32.mrb[0].mxu0
    %974 = vmatprep.mubr.f32.mxu0 0.0
    %975 = vmatmul.mubr.f32.gmra.mrb[0].mxu0 %v807
    %v976 = vpop.f32.mrb[0].mxu0
    %v977 = vadd.f32 0.0, %v976
    %v978 = vpop.f32.mrb[0].mxu0
    %979 = vmatprep.mubr.f32.mxu0 0.0
    %980 = vmatmul.mubr.f32.gmra.mrb[0].mxu0 %v810
    %v981 = vpop.f32.mrb[0].mxu0
    %v982 = vadd.f32 0.0, %v981
    %v983 = vpop.f32.mrb[0].mxu0
    %984 = vmatprep.mubr.f32.mxu0 0.0
    %985 = vmatmul.mubr.f32.gmra.mrb[0].mxu0 %v813
    %v986 = vpop.f32.mrb[0].mxu0
    %v987 = vadd.f32 0.0, %v986
    %v988 = vpop.f32.mrb[0].mxu0
    %989 = vmatprep.mubr.f32.mxu0 0.0
    %990 = vmatmul.mubr.f32.gmra.mrb[0].mxu0 %v816
    %v991 = vpop.f32.mrb[0].mxu0
    %v992 = vadd.f32 0.0, %v991
    %v993 = vpop.f32.mrb[0].mxu0
    %994 = vmatprep.mubr.f32.mxu0 0.0
    %995 = vmatmul.mubr.f32.gmra.mrb[0].mxu0 %v819
    %v996 = vpop.f32.mrb[0].mxu0
    %v997 = vadd.f32 0.0, %v996
    %v998 = vpop.f32.mrb[0].mxu0
    %999 = vmatprep.mubr.f32.mxu0 0.0
    %1000 = vmatmul.mubr.f32.gmra.mrb[0].mxu0 %v822
    %v1001 = vpop.f32.mrb[0].mxu0
    %v1002 = vadd.f32 0.0, %v1001
    %v1003 = vpop.f32.mrb[0].mxu0
    %1004 = vmatprep.mubr.f32.mxu0 0.0
    %1005 = vmatmul.mubr.f32.gmra.mrb[0].mxu0 %v825
    %v1006 = vpop.f32.mrb[0].mxu0
    %v1007 = vadd.f32 0.0, %v1006
    %v1008 = vpop.f32.mrb[0].mxu0
    %1009 = vmatprep.mubr.f32.mxu0 0.0
    %1010 = vmatmul.mubr.f32.gmra.mrb[0].mxu0 %v828
    %v1011 = vpop.f32.mrb[0].mxu0
    %v1012 = vadd.f32 0.0, %v1011
    %v1013 = vpop.f32.mrb[0].mxu0
    %1014 = vmatprep.mubr.f32.mxu0 0.0
    %1015 = vmatmul.mubr.f32.gmra.mrb[0].mxu0 %v831
    %v1016 = vpop.f32.mrb[0].mxu0
    %v1017 = vadd.f32 0.0, %v1016
    %v1018 = vpop.f32.mrb[0].mxu0
    %1019 = vmatprep.mubr.f32.mxu0 0.0
    %1020 = vmatmul.mubr.f32.gmra.mrb[0].mxu0 %v834
    %v1021 = vpop.f32.mrb[0].mxu0
    %v1022 = vadd.f32 0.0, %v1021
    %v1023 = vpop.f32.mrb[0].mxu0
    %1024 = vmatprep.mubr.f32.mxu0 0.0
    %1025 = vmatmul.mubr.f32.gmra.mrb[0].mxu0 %v837
    %v1026 = vpop.f32.mrb[0].mxu0
    %v1027 = vadd.f32 0.0, %v1026
    %v1028 = vpop.f32.mrb[0].mxu0
    %1029 = vmatprep.mubr.f32.mxu0 0.0
    %1030 = vmatmul.mubr.f32.gmra.mrb[0].mxu0 %v840
    %v1031 = vpop.f32.mrb[0].mxu0
    %v1032 = vadd.f32 0.0, %v1031
    %v1033 = vpop.f32.mrb[0].mxu0
    %1034 = vmatprep.mubr.f32.mxu0 0.0
    %1035 = vmatmul.mubr.f32.gmra.mrb[0].mxu0 %v843
    %v1036 = vpop.f32.mrb[0].mxu0
    %v1037 = vadd.f32 0.0, %v1036
    %v1038 = vpop.f32.mrb[0].mxu0
    %1039 = vmatprep.mubr.f32.mxu0 0.0
    %1040 = vmatmul.mubr.f32.gmra.mrb[0].mxu0 %v846
    %v1041 = vpop.f32.mrb[0].mxu0
    %v1042 = vadd.f32 0.0, %v1041
    %v1043 = vpop.f32.mrb[0].mxu0
    %1044 = vmatprep.mubr.f32.mxu0 0.0
    %1045 = vmatmul.mubr.f32.gmra.mrb[0].mxu0 %v849
    %v1046 = vpop.f32.mrb[0].mxu0
    %v1047 = vadd.f32 0.0, %v1046
    %v1048 = vpop.f32.mrb[0].mxu0
    %1049 = vmatprep.mubr.f32.mxu0 0.0
    %1050 = vmatmul.mubr.f32.gmra.mrb[0].mxu0 %v852
    %v1051 = vpop.f32.mrb[0].mxu0
    %v1052 = vadd.f32 0.0, %v1051
    %v1053 = vpop.f32.mrb[0].mxu0
    %1054 = vmatprep.mubr.f32.mxu0 0.0
    %1055 = vmatmul.mubr.f32.gmra.mrb[0].mxu0 %v855
    %v1056 = vpop.f32.mrb[0].mxu0
    %v1057 = vadd.f32 0.0, %v1056
    %v1058 = vpop.f32.mrb[0].mxu0
    %1059 = vmatprep.mubr.f32.mxu0 0.0
    %1060 = vmatmul.mubr.f32.gmra.mrb[0].mxu0 %v858
    %v1061 = vpop.f32.mrb[0].mxu0
    %v1062 = vadd.f32 0.0, %v1061
    %v1063 = vpop.f32.mrb[0].mxu0
    %1064 = vmatprep.mubr.f32.mxu0 0.0
    %1065 = vmatmul.mubr.f32.gmra.mrb[0].mxu0 %v861
    %v1066 = vpop.f32.mrb[0].mxu0
    %v1067 = vadd.f32 0.0, %v1066
    %v1068 = vpop.f32.mrb[0].mxu0
    %1069 = vmatprep.mubr.f32.mxu0 0.0
    %1070 = vmatmul.mubr.f32.gmra.mrb[0].mxu0 %v864
    %v1071 = vpop.f32.mrb[0].mxu0
    %v1072 = vadd.f32 0.0, %v1071
    %v1073 = vpop.f32.mrb[0].mxu0
    %1074 = vmatprep.mubr.f32.mxu0 0.0
    %1075 = vmatmul.mubr.f32.gmra.mrb[0].mxu0 %v867
    %v1076 = vpop.f32.mrb[0].mxu0
    %v1077 = vadd.f32 0.0, %v1076
    %v1078 = vpop.f32.mrb[0].mxu0
    %1079 = vmatprep.mubr.f32.mxu0 0.0
    %1080 = vmatmul.mubr.f32.gmra.mrb[0].mxu0 %v870
    %v1081 = vpop.f32.mrb[0].mxu0
    %v1082 = vadd.f32 0.0, %v1081
    %v1083 = vpop.f32.mrb[0].mxu0
    %1084 = vmatprep.mubr.f32.mxu0 0.0
    %1085 = vmatmul.mubr.f32.gmra.mrb[0].mxu0 %v873
    %v1086 = vpop.f32.mrb[0].mxu0
    %v1087 = vadd.f32 0.0, %v1086
    %v1088 = vpop.f32.mrb[0].mxu0
    %1089 = vmatprep.mubr.f32.mxu0 0.0
    %1090 = vmatmul.mubr.f32.gmra.mrb[0].mxu0 %v876
    %v1091 = vpop.f32.mrb[0].mxu0
    %v1092 = vadd.f32 0.0, %v1091
    %v1093 = vpop.f32.mrb[0].mxu0
    %1094 = vmatprep.mubr.f32.mxu0 0.0
    %1095 = vmatmul.mubr.f32.gmra.mrb[0].mxu0 %v879
    %v1096 = vpop.f32.mrb[0].mxu0
    %v1097 = vadd.f32 0.0, %v1096
    %v1098 = vpop.f32.mrb[0].mxu0
    %1099 = vmatprep.mubr.f32.mxu0 0.0
    %1100 = vmatmul.mubr.f32.gmra.mrb[0].mxu0 %v882
    %v1101 = vpop.f32.mrb[0].mxu0
    %v1102 = vadd.f32 0.0, %v1101
    %v1103 = vpop.f32.mrb[0].mxu0
    %1104 = vmatprep.mubr.f32.mxu0 0.0
    %1105 = vmatmul.mubr.f32.gmra.mrb[0].mxu0 %v885
    %v1106 = vpop.f32.mrb[0].mxu0
    %v1107 = vadd.f32 0.0, %v1106
    %v1108 = vpop.f32.mrb[0].mxu0
    %1109 = vmatprep.mubr.f32.mxu0 0.0
    %1110 = vmatmul.mubr.f32.gmra.mrb[0].mxu0 %v888
    %v1111 = vpop.f32.mrb[0].mxu0
    %v1112 = vadd.f32 0.0, %v1111
    %v1113 = vpop.f32.mrb[0].mxu0
    %1114 = vdwg.mxu0
    %vm1115 = vcmask 261120
    %1116 = vst.msk [vmem:[#allocation3] sm:$0xff] %vm1115, %v957
    %1117 = vst.msk [vmem:[#allocation3 + $0x8] sm:$0xff] %vm1115, %v962
    %1118 = vst.msk [vmem:[#allocation3 + $0x10] sm:$0xff] %vm1115, %v967
    %1119 = vst.msk [vmem:[#allocation3 + $0x18] sm:$0xff] %vm1115, %v972
    %1120 = vst.msk [vmem:[#allocation3 + $0x20] sm:$0xff] %vm1115, %v977
    %1121 = vst.msk [vmem:[#allocation3 + $0x28] sm:$0xff] %vm1115, %v982
    %1122 = vst.msk [vmem:[#allocation3 + $0x30] sm:$0xff] %vm1115, %v987
    %1123 = vst.msk [vmem:[#allocation3 + $0x38] sm:$0xff] %vm1115, %v992
    %1124 = vst.msk [vmem:[#allocation3 + $0x40] sm:$0xff] %vm1115, %v997
    %1125 = vst.msk [vmem:[#allocation3 + $0x48] sm:$0xff] %vm1115, %v1002
    %1126 = vst.msk [vmem:[#allocation3 + $0x50] sm:$0xff] %vm1115, %v1007
    %1127 = vst.msk [vmem:[#allocation3 + $0x58] sm:$0xff] %vm1115, %v1012
    %1128 = vst.msk [vmem:[#allocation3 + $0x60] sm:$0xff] %vm1115, %v1017
    %1129 = vst.msk [vmem:[#allocation3 + $0x68] sm:$0xff] %vm1115, %v1022
    %1130 = vst.msk [vmem:[#allocation3 + $0x70] sm:$0xff] %vm1115, %v1027
    %1131 = vst.msk [vmem:[#allocation3 + $0x78] sm:$0xff] %vm1115, %v1032
    %1132 = vst.msk [vmem:[#allocation3 + $0x80] sm:$0xff] %vm1115, %v1037
    %1133 = vst.msk [vmem:[#allocation3 + $0x88] sm:$0xff] %vm1115, %v1042
    %1134 = vst.msk [vmem:[#allocation3 + $0x90] sm:$0xff] %vm1115, %v1047
    %1135 = vst.msk [vmem:[#allocation3 + $0x98] sm:$0xff] %vm1115, %v1052
    %1136 = vst.msk [vmem:[#allocation3 + $0xa0] sm:$0xff] %vm1115, %v1057
    %1137 = vst.msk [vmem:[#allocation3 + $0xa8] sm:$0xff] %vm1115, %v1062
    %1138 = vst.msk [vmem:[#allocation3 + $0xb0] sm:$0xff] %vm1115, %v1067
    %1139 = vst.msk [vmem:[#allocation3 + $0xb8] sm:$0xff] %vm1115, %v1072
    %1140 = vst.msk [vmem:[#allocation3 + $0xc0] sm:$0xff] %vm1115, %v1077
    %1141 = vst.msk [vmem:[#allocation3 + $0xc8] sm:$0xff] %vm1115, %v1082
    %1142 = vst.msk [vmem:[#allocation3 + $0xd0] sm:$0xff] %vm1115, %v1087
    %1143 = vst.msk [vmem:[#allocation3 + $0xd8] sm:$0xff] %vm1115, %v1092
    %1144 = vst.msk [vmem:[#allocation3 + $0xe0] sm:$0xff] %vm1115, %v1097
    %1145 = vst.msk [vmem:[#allocation3 + $0xe8] sm:$0xff] %vm1115, %v1102
    %1146 = vst.msk [vmem:[#allocation3 + $0xf0] sm:$0xff] %vm1115, %v1107
    %1147 = vst.msk [vmem:[#allocation3 + $0xf8] sm:$0xff] %vm1115, %v1112
    // Predicated region
    $region14: #{interpolate.1} parent=1 // pred_check
      _
    $region15: #{interpolate.1} parent=1 // pred_check_branch
      %1149 = sbr.rel (0) target = $region17
    $region16: #{interpolate.1} parent=1 // pred_region
      %s1151 = ssub.s32 4096, 4096
      %1152 = vsyncadd [#allocation4], %s1151
      %s1153 = sshll.u32 [#allocation3], 4
      %s1154 = int_to_ptr.vmem [resolvable:$true] %s1153
      %1159 = dma.vmem_to_hbm [thread:$0]  %s1154, 4096, %s3, [#allocation4], 128, 128, 8
    $region17: #{interpolate.1} parent=1 // pred_fallthru
      _
    // Predicated region
    $region18: #{interpolate.1} parent=1 // pred_check
      _
    $region19: #{interpolate.1} parent=1 // pred_check_branch
      %1161 = sbr.rel (0) target = $region21
    $region20: #{interpolate.1} parent=1 // pred_region
      %1162 = dma.done [#allocation4], 4096
    $region21: #{interpolate.1} parent=1 // pred_fallthru
      _
    %1163 = vsyncpa [#allocation4], 1

</llo_original>
